<compile_context>
chip_gen: v7x
topology: tpu7x:2x2x1
jax: 0.10.0
libtpu: 0.0.40
codegen_flags: <defaults>
</compile_context>

<pallas_src>
import jax
import jax.numpy as jnp
from jax.experimental import pallas as pl
from jax.experimental.pallas import tpu as pltpu


_DMA_RING = 16                                   # max outstanding DMAs (direct path)
_SMALL_CHUNK_BYTES = 16 * 1024                   # median chunk below this -> VMEM path
_VMEM_PATH_MAX_TOTAL_BYTES = 12 * 1024 * 1024    # 2x fits in 32 MiB scoped VMEM (v7x-safe)


def _build_copy_plan(splits):
    """Builds the static chunk-copy plan for the all-to-all.

    splits[src][dst] = number of rows rank `src` sends to rank `dst`.

    Returns:
      plan: list of (src, dst, src_row_off, dst_row_off, n_rows) for every
            non-empty chunk (static Python ints), sorted by descending size so
            the biggest transfers hit the DMA engines first.
      out_rows: out_rows[dst] = total rows received by rank `dst`.
    """
    world = len(splits)

    in_off = []
    for src in range(world):
        offs, acc = [], 0
        for dst in range(world):
            offs.append(acc)
            acc += int(splits[src][dst])
        in_off.append(offs)

    out_off = [[0] * world for _ in range(world)]
    out_rows = [0] * world
    for dst in range(world):
        acc = 0
        for src in range(world):
            out_off[dst][src] = acc
            acc += int(splits[src][dst])
        out_rows[dst] = acc

    plan = []
    for src in range(world):
        for dst in range(world):
            n = int(splits[src][dst])
            if n > 0:
                plan.append((src, dst, in_off[src][dst], out_off[dst][src], n))

    # Largest chunks first: the big transfers set the HBM-copy critical path,
    # so the issue latency of the tiny descriptors doesn't extend the tail.
    plan.sort(key=lambda c: c[4], reverse=True)
    return plan, out_rows


def _make_direct_kernel(plan, n_in, n_out, ring):
    """Direct path: one HBM->HBM DMA per chunk, bounded to `ring` outstanding."""

    def kernel(*refs):
        in_refs = refs[:n_in]                      # raw HBM refs (pl.ANY)
        out_refs = refs[n_in:n_in + n_out]         # raw HBM refs (pl.ANY)
        sems = refs[n_in + n_out]                  # DMA semaphores, `ring` of them

        copies = []
        for idx, (s, d, s_off, d_off, n) in enumerate(plan):
            if idx >= ring:
                # Reuse semaphore idx % ring: retire the copy that last used it.
                copies[idx - ring].wait()
            cp = pltpu.make_async_copy(
                in_refs[s].at[pl.ds(s_off, n), :],
                out_refs[d].at[pl.ds(d_off, n), :],
                sems.at[idx % ring],
            )
            # TODO(synk): when this shuffle overlaps a compute pallas_call
            # (normal torchrec pipeline), issue at background DMA priority.
            cp.start()
            copies.append(cp)

        # Drain the tail; every copy is waited exactly once.
        for cp in copies[max(0, len(plan) - ring):]:
            cp.wait()

    return kernel


def _make_vmem_kernel(plan, n_in, n_out):
    """Small-chunk path: whole rank tensors in VMEM, reshuffle via row copies."""

    def kernel(*refs):
        in_refs = refs[:n_in]                      # whole arrays in VMEM
        out_refs = refs[n_in:n_in + n_out]         # whole arrays in VMEM
        for (s, d, s_off, d_off, n) in plan:       # static offsets/sizes
            out_refs[d][pl.ds(d_off, n), :] = in_refs[s][pl.ds(s_off, n), :]

    return kernel


def tensor_values_all_to_all(inputs, splits, *, path="auto"):
    """Simulates TensorValuesAllToAll.forward(...).wait() over logical ranks.

    Args:
      inputs: list (length W) of 2-D arrays; inputs[r] is rank r's values,
              shape [sum(splits[r]), emb_dim].
      splits: W x W nested list of ints; splits[src][dst] = rows rank src
              sends to rank dst.  (Rank r's view: input_splits = splits[r],
              output_splits = [splits[s][r] for s in range(W)].)
      path:   "auto" | "vmem" | "direct" kernel-path override.

    Returns:
      List of W arrays; element d is rank d's received tensor of shape
      [sum_src splits[src][d], emb_dim] (same ordering as all_to_all_single).
    """
    world_size = len(inputs)
    assert len(splits) == world_size
    assert all(len(row) == world_size for row in splits)

    # TODO(synk): 1-D values path (input.dim() == 1 in the torch module) —
    # only 2-D [rows, emb_dim] values are handled here.
    emb_dim = inputs[0].shape[1]
    dtype = inputs[0].dtype
    for r, t in enumerate(inputs):
        assert t.ndim == 2 and t.shape[1] == emb_dim and t.dtype == dtype
        assert t.shape[0] == sum(int(s) for s in splits[r])

    if world_size == 1:
        # torch: self._dist_values = input  -> zero data movement.
        return [inputs[0]]

    plan, out_rows = _build_copy_plan(splits)

    # TODO(synk): splits are baked into the trace (plan + out_shape), so
    # per-batch split changes recompile; avoiding that needs scalar-prefetched
    # offsets plus max-padded output shapes (an API change for callers).

    itemsize = jnp.dtype(dtype).itemsize
    total_bytes = sum(out_rows) * emb_dim * itemsize

    if path == "auto":
        chunk_bytes = sorted(c[4] * emb_dim * itemsize for c in plan)
        median = chunk_bytes[len(chunk_bytes) // 2] if chunk_bytes else 0
        use_vmem = (median < _SMALL_CHUNK_BYTES
                    and total_bytes <= _VMEM_PATH_MAX_TOTAL_BYTES)
    elif path == "vmem":
        assert total_bytes <= _VMEM_PATH_MAX_TOTAL_BYTES, "too large for VMEM path"
        use_vmem = True
    else:
        assert path == "direct"
        use_vmem = False

    # torch's all_to_all_single allows zero-row senders/receivers; drop them
    # from the pallas_call (Mosaic buffers must be non-empty) and remap the
    # plan's rank ids to argument positions.
    live_in = [r for r in range(world_size) if inputs[r].shape[0] > 0]
    live_out = [d for d in range(world_size) if out_rows[d] > 0]
    in_pos = {r: i for i, r in enumerate(live_in)}
    out_pos = {d: i for i, d in enumerate(live_out)}
    plan = [(in_pos[s], out_pos[d], so, do, n) for (s, d, so, do, n) in plan]

    live_inputs = [inputs[r] for r in live_in]
    out_shape = tuple(
        jax.ShapeDtypeStruct((out_rows[d], emb_dim), dtype) for d in live_out
    )
    n_in, n_out = len(live_inputs), len(live_out)

    if n_out == 0:
        results_live = ()
    elif use_vmem:
        kernel = _make_vmem_kernel(plan, n_in, n_out)
        results_live = pl.pallas_call(
            kernel,
            out_shape=out_shape,
            in_specs=[pl.BlockSpec(memory_space=pltpu.MemorySpace.VMEM)
                      for _ in range(n_in)],
            out_specs=tuple(pl.BlockSpec(memory_space=pltpu.MemorySpace.VMEM)
                            for _ in range(n_out)),
            compiler_params=pltpu.CompilerParams(vmem_limit_bytes=32 << 20),
        )(*live_inputs)
    else:
        ring = min(_DMA_RING, len(plan))
        kernel = _make_direct_kernel(plan, n_in, n_out, ring)
        results_live = pl.pallas_call(
            kernel,
            out_shape=out_shape,
            # Inputs/outputs stay in HBM; data moves purely via async DMAs.
            in_specs=[pl.BlockSpec(memory_space=pl.ANY) for _ in range(n_in)],
            out_specs=tuple(pl.BlockSpec(memory_space=pl.ANY)
                            for _ in range(n_out)),
            scratch_shapes=[pltpu.SemaphoreType.DMA((ring,))],
        )(*live_inputs)
        # TODO(synk): on v7x, split the copy plan across the two TensorCores
        # (core-parallel grid axis) to halve DMA-issue time for many-chunk plans.

    if not isinstance(results_live, (list, tuple)):
        results_live = (results_live,)

    outputs, it = [], iter(results_live)
    for d in range(world_size):
        if out_rows[d] > 0:
            outputs.append(next(it))
        else:
            outputs.append(jnp.zeros((0, emb_dim), dtype=dtype))
    return outputs


def _reference_all_to_all(inputs, splits):
    """Pure-jnp reference of all_to_all_single row redistribution."""
    world = len(inputs)
    outs = []
    for dst in range(world):
        chunks = []
        for src in range(world):
            off = sum(int(s) for s in splits[src][:dst])
            n = int(splits[src][dst])
            chunks.append(inputs[src][off:off + n])
        outs.append(jnp.concatenate(chunks, axis=0))
    return outs


if __name__ == "__main__":
    # W logical ranks simulated on one TPU.  emb_dim is a multiple of 128 so
    # every moved slab is lane-dense; split sizes are deliberately NOT
    # multiples of 8 to exercise arbitrary row offsets.
    world_size = 4
    emb_dim = 128
    splits = [
        [1, 2, 3, 2],  # rank 0 sends 8 rows total
        [2, 1, 2, 3],  # rank 1 sends 8 rows total
        [3, 2, 1, 2],  # rank 2 sends 8 rows total
        [2, 3, 2, 1],  # rank 3 sends 8 rows total
    ]

    key = jax.random.PRNGKey(0)
    keys = jax.random.split(key, world_size)
    inputs = [
        jax.random.normal(keys[r], (sum(splits[r]), emb_dim), dtype=jnp.float32)
        for r in range(world_size)
    ]

    want = _reference_all_to_all(inputs, splits)

    # torchrec-style tiny chunks -> "auto" picks the VMEM-staged path.
    got_vmem = jax.block_until_ready(tensor_values_all_to_all(inputs, splits))
    # Same data through the large-chunk direct HBM->HBM DMA path.
    got_direct = jax.block_until_ready(
        tensor_values_all_to_all(inputs, splits, path="direct"))

    for got in (got_vmem, got_direct):
        for g, ref in zip(got, want):
            assert g.shape == ref.shape and g.dtype == ref.dtype
            assert bool(jnp.all(g == ref))

    # Degenerate pg.size() == 1 path: identity, zero copies (matches torch).
    single = tensor_values_all_to_all([inputs[0]], [[inputs[0].shape[0]]])
    assert single[0] is inputs[0]

    print("KERNEL_OK")
</pallas_src>

<mosaic_0001>
module attributes {stable_mosaic.version = 11 : i64} {
  func.func @kernel(%arg0: memref<8x128xf32, #tpu.memory_space<vmem>>, %arg1: memref<8x128xf32, #tpu.memory_space<vmem>>, %arg2: memref<8x128xf32, #tpu.memory_space<vmem>>, %arg3: memref<8x128xf32, #tpu.memory_space<vmem>>, %arg4: memref<8x128xf32, #tpu.memory_space<vmem>>, %arg5: memref<8x128xf32, #tpu.memory_space<vmem>>, %arg6: memref<8x128xf32, #tpu.memory_space<vmem>>, %arg7: memref<8x128xf32, #tpu.memory_space<vmem>>) attributes {dimension_semantics = [], scalar_prefetch = 0 : i64, scratch_operands = 0 : i64, tpu.core_type = #tpu.core_type<tc>} {
    %c3 = arith.constant 3 : index
    %c0 = arith.constant 0 : index
    %0 = vector.load %arg0[%c3, %c0] : memref<8x128xf32, #tpu.memory_space<vmem>>, vector<3x128xf32>
    %c0_0 = arith.constant 0 : index
    %c0_1 = arith.constant 0 : index
    %1 = vector.load %arg6[%c0_0, %c0_1] : memref<8x128xf32, #tpu.memory_space<vmem>>, vector<3x128xf32>
    tpu.vector_store %arg6[%c0_0, %c0_1], %0 {strides = array<i32>} : memref<8x128xf32, #tpu.memory_space<vmem>>, vector<3x128xf32>,
    %c5 = arith.constant 5 : index
    %c0_2 = arith.constant 0 : index
    %2 = vector.load %arg1[%c5, %c0_2] : memref<8x128xf32, #tpu.memory_space<vmem>>, vector<3x128xf32>
    %c2 = arith.constant 2 : index
    %c0_3 = arith.constant 0 : index
    %3 = vector.load %arg7[%c2, %c0_3] : memref<8x128xf32, #tpu.memory_space<vmem>>, vector<3x128xf32>
    tpu.vector_store %arg7[%c2, %c0_3], %2 {strides = array<i32>} : memref<8x128xf32, #tpu.memory_space<vmem>>, vector<3x128xf32>,
    %c0_4 = arith.constant 0 : index
    %c0_5 = arith.constant 0 : index
    %4 = vector.load %arg2[%c0_4, %c0_5] : memref<8x128xf32, #tpu.memory_space<vmem>>, vector<3x128xf32>
    %c3_6 = arith.constant 3 : index
    %c0_7 = arith.constant 0 : index
    %5 = vector.load %arg4[%c3_6, %c0_7] : memref<8x128xf32, #tpu.memory_space<vmem>>, vector<3x128xf32>
    tpu.vector_store %arg4[%c3_6, %c0_7], %4 {strides = array<i32>} : memref<8x128xf32, #tpu.memory_space<vmem>>, vector<3x128xf32>,
    %c2_8 = arith.constant 2 : index
    %c0_9 = arith.constant 0 : index
    %6 = vector.load %arg3[%c2_8, %c0_9] : memref<8x128xf32, #tpu.memory_space<vmem>>, vector<3x128xf32>
    %c5_10 = arith.constant 5 : index
    %c0_11 = arith.constant 0 : index
    %7 = vector.load %arg5[%c5_10, %c0_11] : memref<8x128xf32, #tpu.memory_space<vmem>>, vector<3x128xf32>
    tpu.vector_store %arg5[%c5_10, %c0_11], %6 {strides = array<i32>} : memref<8x128xf32, #tpu.memory_space<vmem>>, vector<3x128xf32>,
    %c1 = arith.constant 1 : index
    %c0_12 = arith.constant 0 : index
    %8 = vector.load %arg0[%c1, %c0_12] : memref<8x128xf32, #tpu.memory_space<vmem>>, vector<2x128xf32>
    %c0_13 = arith.constant 0 : index
    %c0_14 = arith.constant 0 : index
    %9 = vector.load %arg5[%c0_13, %c0_14] : memref<8x128xf32, #tpu.memory_space<vmem>>, vector<2x128xf32>
    tpu.vector_store %arg5[%c0_13, %c0_14], %8 {strides = array<i32>} : memref<8x128xf32, #tpu.memory_space<vmem>>, vector<2x128xf32>,
    %c6 = arith.constant 6 : index
    %c0_15 = arith.constant 0 : index
    %10 = vector.load %arg0[%c6, %c0_15] : memref<8x128xf32, #tpu.memory_space<vmem>>, vector<2x128xf32>
    %c0_16 = arith.constant 0 : index
    %c0_17 = arith.constant 0 : index
    %11 = vector.load %arg7[%c0_16, %c0_17] : memref<8x128xf32, #tpu.memory_space<vmem>>, vector<2x128xf32>
    tpu.vector_store %arg7[%c0_16, %c0_17], %10 {strides = array<i32>} : memref<8x128xf32, #tpu.memory_space<vmem>>, vector<2x128xf32>,
    %c0_18 = arith.constant 0 : index
    %c0_19 = arith.constant 0 : index
    %12 = vector.load %arg1[%c0_18, %c0_19] : memref<8x128xf32, #tpu.memory_space<vmem>>, vector<2x128xf32>
    %c1_20 = arith.constant 1 : index
    %c0_21 = arith.constant 0 : index
    %13 = vector.load %arg4[%c1_20, %c0_21] : memref<8x128xf32, #tpu.memory_space<vmem>>, vector<2x128xf32>
    tpu.vector_store %arg4[%c1_20, %c0_21], %12 {strides = array<i32>} : memref<8x128xf32, #tpu.memory_space<vmem>>, vector<2x128xf32>,
    %c3_22 = arith.constant 3 : index
    %c0_23 = arith.constant 0 : index
    %14 = vector.load %arg1[%c3_22, %c0_23] : memref<8x128xf32, #tpu.memory_space<vmem>>, vector<2x128xf32>
    %c3_24 = arith.constant 3 : index
    %c0_25 = arith.constant 0 : index
    %15 = vector.load %arg6[%c3_24, %c0_25] : memref<8x128xf32, #tpu.memory_space<vmem>>, vector<2x128xf32>
    tpu.vector_store %arg6[%c3_24, %c0_25], %14 {strides = array<i32>} : memref<8x128xf32, #tpu.memory_space<vmem>>, vector<2x128xf32>,
    %c3_26 = arith.constant 3 : index
    %c0_27 = arith.constant 0 : index
    %16 = vector.load %arg2[%c3_26, %c0_27] : memref<8x128xf32, #tpu.memory_space<vmem>>, vector<2x128xf32>
    %c3_28 = arith.constant 3 : index
    %c0_29 = arith.constant 0 : index
    %17 = vector.load %arg5[%c3_28, %c0_29] : memref<8x128xf32, #tpu.memory_space<vmem>>, vector<2x128xf32>
    tpu.vector_store %arg5[%c3_28, %c0_29], %16 {strides = array<i32>} : memref<8x128xf32, #tpu.memory_space<vmem>>, vector<2x128xf32>,
    %c6_30 = arith.constant 6 : index
    %c0_31 = arith.constant 0 : index
    %18 = vector.load %arg2[%c6_30, %c0_31] : memref<8x128xf32, #tpu.memory_space<vmem>>, vector<2x128xf32>
    %c5_32 = arith.constant 5 : index
    %c0_33 = arith.constant 0 : index
    %19 = vector.load %arg7[%c5_32, %c0_33] : memref<8x128xf32, #tpu.memory_space<vmem>>, vector<2x128xf32>
    tpu.vector_store %arg7[%c5_32, %c0_33], %18 {strides = array<i32>} : memref<8x128xf32, #tpu.memory_space<vmem>>, vector<2x128xf32>,
    %c0_34 = arith.constant 0 : index
    %c0_35 = arith.constant 0 : index
    %20 = vector.load %arg3[%c0_34, %c0_35] : memref<8x128xf32, #tpu.memory_space<vmem>>, vector<2x128xf32>
    %c6_36 = arith.constant 6 : index
    %c0_37 = arith.constant 0 : index
    %21 = vector.load %arg4[%c6_36, %c0_37] : memref<8x128xf32, #tpu.memory_space<vmem>>, vector<2x128xf32>
    tpu.vector_store %arg4[%c6_36, %c0_37], %20 {strides = array<i32>} : memref<8x128xf32, #tpu.memory_space<vmem>>, vector<2x128xf32>,
    %c5_38 = arith.constant 5 : index
    %c0_39 = arith.constant 0 : index
    %22 = vector.load %arg3[%c5_38, %c0_39] : memref<8x128xf32, #tpu.memory_space<vmem>>, vector<2x128xf32>
    %c6_40 = arith.constant 6 : index
    %c0_41 = arith.constant 0 : index
    %23 = vector.load %arg6[%c6_40, %c0_41] : memref<8x128xf32, #tpu.memory_space<vmem>>, vector<2x128xf32>
    tpu.vector_store %arg6[%c6_40, %c0_41], %22 {strides = array<i32>} : memref<8x128xf32, #tpu.memory_space<vmem>>, vector<2x128xf32>,
    %c0_42 = arith.constant 0 : index
    %c0_43 = arith.constant 0 : index
    %24 = vector.load %arg0[%c0_42, %c0_43] : memref<8x128xf32, #tpu.memory_space<vmem>>, vector<1x128xf32>
    %c0_44 = arith.constant 0 : index
    %c0_45 = arith.constant 0 : index
    %25 = vector.load %arg4[%c0_44, %c0_45] : memref<8x128xf32, #tpu.memory_space<vmem>>, vector<1x128xf32>
    tpu.vector_store %arg4[%c0_44, %c0_45], %24 {strides = array<i32>} : memref<8x128xf32, #tpu.memory_space<vmem>>, vector<1x128xf32>,
    %c2_46 = arith.constant 2 : index
    %c0_47 = arith.constant 0 : index
    %26 = vector.load %arg1[%c2_46, %c0_47] : memref<8x128xf32, #tpu.memory_space<vmem>>, vector<1x128xf32>
    %c2_48 = arith.constant 2 : index
    %c0_49 = arith.constant 0 : index
    %27 = vector.load %arg5[%c2_48, %c0_49] : memref<8x128xf32, #tpu.memory_space<vmem>>, vector<1x128xf32>
    tpu.vector_store %arg5[%c2_48, %c0_49], %26 {strides = array<i32>} : memref<8x128xf32, #tpu.memory_space<vmem>>, vector<1x128xf32>,
    %c5_50 = arith.constant 5 : index
    %c0_51 = arith.constant 0 : index
    %28 = vector.load %arg2[%c5_50, %c0_51] : memref<8x128xf32, #tpu.memory_space<vmem>>, vector<1x128xf32>
    %c5_52 = arith.constant 5 : index
    %c0_53 = arith.constant 0 : index
    %29 = vector.load %arg6[%c5_52, %c0_53] : memref<8x128xf32, #tpu.memory_space<vmem>>, vector<1x128xf32>
    tpu.vector_store %arg6[%c5_52, %c0_53], %28 {strides = array<i32>} : memref<8x128xf32, #tpu.memory_space<vmem>>, vector<1x128xf32>,
    %c7 = arith.constant 7 : index
    %c0_54 = arith.constant 0 : index
    %30 = vector.load %arg3[%c7, %c0_54] : memref<8x128xf32, #tpu.memory_space<vmem>>, vector<1x128xf32>
    %c7_55 = arith.constant 7 : index
    %c0_56 = arith.constant 0 : index
    %31 = vector.load %arg7[%c7_55, %c0_56] : memref<8x128xf32, #tpu.memory_space<vmem>>, vector<1x128xf32>
    tpu.vector_store %arg7[%c7_55, %c0_56], %30 {strides = array<i32>} : memref<8x128xf32, #tpu.memory_space<vmem>>, vector<1x128xf32>,
    return
  }
}

</mosaic_0001>

<llo_original>
// kernel: tpu_custom_call.1
$region0: #{tpu_custom_call.1}
  #allocation0 [shape = 'u32[]', space=smem, size = 0x4, offset = 0x4, fixed_abs, tag = 'smem constant byte address 0x4 - core index']
  #allocation1 [shape = 'u32[144,128]{1,0:T(1,128)}', space=vmem, size = 0x12000, scoped, tag = 'internal scratch']
  %s0 = inlined_call_operand.hbm [shape: f32[8,128], index: 0, kind: input, shape index: {}]
  %s1 = inlined_call_operand.hbm [shape: f32[8,128], index: 1, kind: input, shape index: {}]
  %s2 = inlined_call_operand.hbm [shape: f32[8,128], index: 2, kind: input, shape index: {}]
  %s3 = inlined_call_operand.vmem [shape: f32[8,128], index: 3, kind: input, shape index: {}]
  %s4 = inlined_call_operand.hbm [shape: f32[8,128], index: 4, kind: output, shape index: {0}]
  %s5 = inlined_call_operand.hbm [shape: f32[8,128], index: 5, kind: output, shape index: {1}]
  %s6 = inlined_call_operand.hbm [shape: f32[8,128], index: 6, kind: output, shape index: {2}]
  %s7 = inlined_call_operand.hbm [shape: f32[8,128], index: 7, kind: output, shape index: {3}]
  %8 = xla_tuple %s4, %s5, %s6, %s7
  %s9 = sld [smem:[#allocation0]]
  $region62: #{tpu_custom_call.1} parent=0
    _
  %s11 = ssub.s32 1, %s9
  %s12 = scalar_select 0, %s11, %s9
  $region1: #{tpu_custom_call.1} parent=0
    #allocation2 [shape = 'u8[4096]{0}', space=vmem, size = 0x1000, scoped, tag = 'input window, operand 0, single buffered']
    #allocation3 [shape = 's32[1]{0}', space=sflag, size = 0x4, scoped, tag = 'scoped memory for tpu_custom_call.1']
    #allocation4 [shape = 's32[1]{0}', space=sflag, size = 0x4, scoped, tag = 'scoped memory for tpu_custom_call.1']
    #allocation5 [shape = 'u8[4096]{0}', space=vmem, size = 0x1000, scoped, tag = 'input window, operand 1, single buffered']
    #allocation6 [shape = 's32[1]{0}', space=sflag, size = 0x4, scoped, tag = 'scoped memory for tpu_custom_call.1']
    #allocation7 [shape = 'u8[4096]{0}', space=vmem, size = 0x1000, scoped, tag = 'input window, operand 2, single buffered']
    #allocation8 [shape = 'u8[4096]{0}', space=vmem, size = 0x1000, scoped, tag = 'output window, operand 0, single buffered']
    #allocation9 [shape = 'u8[4096]{0}', space=vmem, size = 0x1000, scoped, tag = 'output window, operand 1, single buffered']
    #allocation10 [shape = 's32[1]{0}', space=sflag, size = 0x4, scoped, tag = 'scoped memory for tpu_custom_call.1']
    #allocation11 [shape = 'u8[4096]{0}', space=vmem, size = 0x1000, scoped, tag = 'output window, operand 2, single buffered']
    #allocation12 [shape = 'u8[4096]{0}', space=vmem, size = 0x1000, scoped, tag = 'output window, operand 3, single buffered']
    #allocation13 [shape = 's32[1]{0}', space=sflag, size = 0x4, scoped, tag = 'scoped memory for tpu_custom_call.1']
    %13 = vsyncpa [#allocation3], 0
    %14 = vsyncpa [#allocation6], 0
    %15 = vsyncpa [#allocation4], 0
    %16 = vsyncpa [#allocation10], 0
    %17 = vsyncpa [#allocation13], 0
    // Predicated region
    $region2: #{tpu_custom_call.1} parent=1 // pred_check
      _
    $region3: #{tpu_custom_call.1} parent=1 // pred_check_branch
      %19 = sbr.rel (0) target = $region5
    $region4: #{tpu_custom_call.1} parent=1 // pred_region
      %s21 = ssub.s32 128, 128
      %22 = vsyncadd [#allocation3], %s21
      %s24 = sshll.u32 [#allocation2], 4
      %s25 = int_to_ptr.vmem [resolvable:$true] %s24
      %27 = dma.hbm_to_vmem [thread:$0]  %s0, 128, %s25, [#allocation3]
    $region5: #{tpu_custom_call.1} parent=1 // pred_fallthru
      _
    // Predicated region
    $region6: #{tpu_custom_call.1} parent=1 // pred_check
      _
    $region7: #{tpu_custom_call.1} parent=1 // pred_check_branch
      %29 = sbr.rel (0) target = $region9
    $region8: #{tpu_custom_call.1} parent=1 // pred_region
      %s31 = ssub.s32 128, 128
      %32 = vsyncadd [#allocation6], %s31
      %s34 = sshll.u32 [#allocation5], 4
      %s35 = int_to_ptr.vmem [resolvable:$true] %s34
      %37 = dma.hbm_to_vmem [thread:$0]  %s1, 128, %s35, [#allocation6]
    $region9: #{tpu_custom_call.1} parent=1 // pred_fallthru
      _
    // Predicated region
    $region10: #{tpu_custom_call.1} parent=1 // pred_check
      _
    $region11: #{tpu_custom_call.1} parent=1 // pred_check_branch
      %39 = sbr.rel (0) target = $region13
    $region12: #{tpu_custom_call.1} parent=1 // pred_region
      %s41 = ssub.s32 128, 128
      %42 = vsyncadd [#allocation6], %s41
      %s44 = sshll.u32 [#allocation7], 4
      %s45 = int_to_ptr.vmem [resolvable:$true] %s44
      %47 = dma.hbm_to_vmem [thread:$0]  %s2, 128, %s45, [#allocation6]
    $region13: #{tpu_custom_call.1} parent=1 // pred_fallthru
      _
    // Predicated region
    $region14: #{tpu_custom_call.1} parent=1 // pred_check
      _
    $region15: #{tpu_custom_call.1} parent=1 // pred_check_branch
      %49 = sbr.rel (0) target = $region17
    $region16: #{tpu_custom_call.1} parent=1 // pred_region
      _
    $region17: #{tpu_custom_call.1} parent=1 // pred_fallthru
      _
    // Predicated region
    $region18: #{tpu_custom_call.1} parent=1 // pred_check
      _
    $region19: #{tpu_custom_call.1} parent=1 // pred_check_branch
      %51 = sbr.rel (0) target = $region21
    $region20: #{tpu_custom_call.1} parent=1 // pred_region
      %52 = dma.done [#allocation3], 128
    $region21: #{tpu_custom_call.1} parent=1 // pred_fallthru
      _
    // Predicated region
    $region22: #{tpu_custom_call.1} parent=1 // pred_check
      _
    $region23: #{tpu_custom_call.1} parent=1 // pred_check_branch
      %54 = sbr.rel (0) target = $region25
    $region24: #{tpu_custom_call.1} parent=1 // pred_region
      %55 = dma.done [#allocation6], 128
    $region25: #{tpu_custom_call.1} parent=1 // pred_fallthru
      _
    // Predicated region
    $region26: #{tpu_custom_call.1} parent=1 // pred_check
      _
    $region27: #{tpu_custom_call.1} parent=1 // pred_check_branch
      %57 = sbr.rel (0) target = $region29
    $region28: #{tpu_custom_call.1} parent=1 // pred_region
      %58 = dma.done [#allocation6], 128
    $region29: #{tpu_custom_call.1} parent=1 // pred_fallthru
      _
    %v59 = vld [vmem:[#allocation2 + $0x3] sm:$0x7]
    %60 = vst [vmem:[#allocation11] sm:$0x7] %v59
    %v61 = vld [vmem:[#allocation5 + $0x5] sm:$0x7]
    %62 = vst [vmem:[#allocation12 + $0x2] sm:$0x7] %v61
    %v63 = vld [vmem:[#allocation7] sm:$0x7]
    %64 = vst [vmem:[#allocation8 + $0x3] sm:$0x7] %v63
    %v65 = vld [vmem:[%s3 + $0x2] sm:$0x7]
    %66 = vst [vmem:[#allocation9 + $0x5] sm:$0x7] %v65
    %v67 = vld [vmem:[#allocation2 + $0x1] sm:$0x3]
    %68 = vst [vmem:[#allocation9] sm:$0x3] %v67
    %v69 = vld [vmem:[#allocation2 + $0x6] sm:$0x3]
    %70 = vst [vmem:[#allocation12] sm:$0x3] %v69
    %v71 = vld [vmem:[#allocation5] sm:$0x3]
    %72 = vst [vmem:[#allocation8 + $0x1] sm:$0x3] %v71
    %v73 = vld [vmem:[#allocation5 + $0x3] sm:$0x3]
    %74 = vst [vmem:[#allocation11 + $0x3] sm:$0x3] %v73
    %v75 = vld [vmem:[#allocation7 + $0x3] sm:$0x3]
    %76 = vst [vmem:[#allocation9 + $0x3] sm:$0x3] %v75
    %v77 = vld [vmem:[#allocation7 + $0x6] sm:$0x3]
    %78 = vst [vmem:[#allocation12 + $0x5] sm:$0x3] %v77
    %v79 = vld [vmem:[%s3] sm:$0x3]
    %80 = vst [vmem:[#allocation8 + $0x6] sm:$0x3] %v79
    %v81 = vld [vmem:[%s3 + $0x5] sm:$0x3]
    %82 = vst [vmem:[#allocation11 + $0x6] sm:$0x3] %v81
    %v83 = vld [vmem:[#allocation2] sm:$0x1]
    %84 = vst [vmem:[#allocation8] sm:$0x1] %v83
    %v85 = vld [vmem:[#allocation5 + $0x2] sm:$0x1]
    %86 = vst [vmem:[#allocation9 + $0x2] sm:$0x1] %v85
    %v87 = vld [vmem:[#allocation7 + $0x5] sm:$0x1]
    %88 = vst [vmem:[#allocation11 + $0x5] sm:$0x1] %v87
    %v89 = vld [vmem:[%s3 + $0x7] sm:$0x1]
    %90 = vst [vmem:[#allocation12 + $0x7] sm:$0x1] %v89
    // Predicated region
    $region30: #{tpu_custom_call.1} parent=1 // pred_check
      _
    $region31: #{tpu_custom_call.1} parent=1 // pred_check_branch
      %92 = sbr.rel (0) target = $region33
    $region32: #{tpu_custom_call.1} parent=1 // pred_region
      %s94 = ssub.s32 128, 128
      %95 = vsyncadd [#allocation4], %s94
      %s97 = sshll.u32 [#allocation8], 4
      %s98 = int_to_ptr.vmem [resolvable:$true] %s97
      %100 = dma.vmem_to_hbm [thread:$0]  %s98, 128, %s4, [#allocation4]
    $region33: #{tpu_custom_call.1} parent=1 // pred_fallthru
      _
    // Predicated region
    $region34: #{tpu_custom_call.1} parent=1 // pred_check
      _
    $region35: #{tpu_custom_call.1} parent=1 // pred_check_branch
      %102 = sbr.rel (0) target = $region37
    $region36: #{tpu_custom_call.1} parent=1 // pred_region
      %s104 = ssub.s32 128, 128
      %105 = vsyncadd [#allocation10], %s104
      %s107 = sshll.u32 [#allocation9], 4
      %s108 = int_to_ptr.vmem [resolvable:$true] %s107
      %110 = dma.vmem_to_hbm [thread:$0]  %s108, 128, %s5, [#allocation10]
    $region37: #{tpu_custom_call.1} parent=1 // pred_fallthru
      _
    // Predicated region
    $region38: #{tpu_custom_call.1} parent=1 // pred_check
      _
    $region39: #{tpu_custom_call.1} parent=1 // pred_check_branch
      %112 = sbr.rel (0) target = $region41
    $region40: #{tpu_custom_call.1} parent=1 // pred_region
      %s114 = ssub.s32 128, 128
      %115 = vsyncadd [#allocation10], %s114
      %s117 = sshll.u32 [#allocation11], 4
      %s118 = int_to_ptr.vmem [resolvable:$true] %s117
      %120 = dma.vmem_to_hbm [thread:$0]  %s118, 128, %s6, [#allocation10]
    $region41: #{tpu_custom_call.1} parent=1 // pred_fallthru
      _
    // Predicated region
    $region42: #{tpu_custom_call.1} parent=1 // pred_check
      _
    $region43: #{tpu_custom_call.1} parent=1 // pred_check_branch
      %122 = sbr.rel (0) target = $region45
    $region44: #{tpu_custom_call.1} parent=1 // pred_region
      %s124 = ssub.s32 128, 128
      %125 = vsyncadd [#allocation13], %s124
      %s127 = sshll.u32 [#allocation12], 4
      %s128 = int_to_ptr.vmem [resolvable:$true] %s127
      %130 = dma.vmem_to_hbm [thread:$0]  %s128, 128, %s7, [#allocation13]
    $region45: #{tpu_custom_call.1} parent=1 // pred_fallthru
      _
    // Predicated region
    $region46: #{tpu_custom_call.1} parent=1 // pred_check
      _
    $region47: #{tpu_custom_call.1} parent=1 // pred_check_branch
      %132 = sbr.rel (0) target = $region49
    $region48: #{tpu_custom_call.1} parent=1 // pred_region
      %133 = dma.done [#allocation4], 128
    $region49: #{tpu_custom_call.1} parent=1 // pred_fallthru
      _
    // Predicated region
    $region50: #{tpu_custom_call.1} parent=1 // pred_check
      _
    $region51: #{tpu_custom_call.1} parent=1 // pred_check_branch
      %135 = sbr.rel (0) target = $region53
    $region52: #{tpu_custom_call.1} parent=1 // pred_region
      %136 = dma.done [#allocation10], 128
    $region53: #{tpu_custom_call.1} parent=1 // pred_fallthru
      _
    // Predicated region
    $region54: #{tpu_custom_call.1} parent=1 // pred_check
      _
    $region55: #{tpu_custom_call.1} parent=1 // pred_check_branch
      %138 = sbr.rel (0) target = $region57
    $region56: #{tpu_custom_call.1} parent=1 // pred_region
      %139 = dma.done [#allocation10], 128
    $region57: #{tpu_custom_call.1} parent=1 // pred_fallthru
      _
    // Predicated region
    $region58: #{tpu_custom_call.1} parent=1 // pred_check
      _
    $region59: #{tpu_custom_call.1} parent=1 // pred_check_branch
      %141 = sbr.rel (0) target = $region61
    $region60: #{tpu_custom_call.1} parent=1 // pred_region
      %142 = dma.done [#allocation13], 128
    $region61: #{tpu_custom_call.1} parent=1 // pred_fallthru
      _
    %143 = vsyncpa [#allocation3], 1
    %144 = vsyncpa [#allocation6], 1
    %145 = vsyncpa [#allocation4], 1
    %146 = vsyncpa [#allocation10], 1
    %147 = vsyncpa [#allocation13], 1

</llo_original>
